<compile_context>
chip_gen: v5e
topology: v5e:2x2
jax: 0.10.0
libtpu: 0.0.40
codegen_flags: <defaults>
</compile_context>

<pallas_src>
import functools
import math

import jax
import jax.numpy as jnp
import numpy as np
from jax.experimental import pallas as pl
from jax.experimental.pallas import tpu as pltpu


def _round_up(x, m):
    return (x + m - 1) // m * m


def _conv2d_kernel(x_ref, w_ref, b_ref, o_ref, *, kh_taps, kw_taps, w_row,
                   n_flat, bgroup):
    """Stride-1 conv for one group of batch elements as fused im2col matmuls.

    x_ref : (bgroup, C_pad, l_flat)       bf16, spatially flattened, zero padded
    w_ref : (C_out, kh*kw*C_pad)          bf16, weights in (kh, kw, c) order
    b_ref : (C_out, 1)                    f32 bias
    o_ref : (bgroup, C_out, n_flat)       f32 stride-1 output on padded-width grid
    """
    w = w_ref[...]
    bias = b_ref[...]
    for bb in range(bgroup):                     # small, unrolled; no grid overhead
        x = x_ref[bb]                            # (C_pad, l_flat)
        # im2col from lane-shifted slices; C_pad % 8 == 0 -> aligned vreg copies.
        cols = []
        for kh in range(kh_taps):
            for kw in range(kw_taps):
                shift = kh * w_row + kw
                cols.append(x[:, shift:shift + n_flat])
        xcol = jnp.concatenate(cols, axis=0)     # (K, n_flat)
        # Single fused MXU matmul, f32 accumulation; bias add is a free VPU op.
        acc = jnp.dot(w, xcol, preferred_element_type=jnp.float32)
        o_ref[bb] = (acc + bias).astype(o_ref.dtype)


def conv2d_pallas(x, w, b, *, stride=1, padding=0):
    """NCHW Conv2d forward matching torch.nn.Conv2d (square stride/padding)."""
    B, C_in, H, W = x.shape
    C_out, C_in_w, kH, kW = w.shape
    assert C_in == C_in_w, "channel mismatch"
    s, p = int(stride), int(padding)

    H_out = (H + 2 * p - kH) // s + 1
    W_out = (W + 2 * p - kW) // s + 1
    assert H_out > 0 and W_out > 0, "kernel larger than padded input"

    # Spatial zero padding (torch 'padding').
    x_pad = jnp.pad(x, ((0, 0), (0, 0), (p, p), (p, p)))
    H_pad, W_pad = H + 2 * p, W + 2 * p

    if s > 1:
        # Space-to-depth: stride-s conv == stride-1 conv on a (C*s*s)-channel,
        # (H/s, W/s)-spatial tensor with a ceil(k/s) kernel (exact).
        H_pad2, W_pad2 = _round_up(H_pad, s), _round_up(W_pad, s)
        x_pad = jnp.pad(x_pad, ((0, 0), (0, 0),
                                (0, H_pad2 - H_pad), (0, W_pad2 - W_pad)))
        qH, qW = -(-kH // s), -(-kW // s)
        xs = x_pad.reshape(B, C_in, H_pad2 // s, s, W_pad2 // s, s)
        xs = xs.transpose(0, 1, 3, 5, 2, 4)               # (B, C, rh, rw, H', W')
        x_eff = xs.reshape(B, C_in * s * s, H_pad2 // s, W_pad2 // s)
        w_padk = jnp.pad(w, ((0, 0), (0, 0), (0, qH * s - kH), (0, qW * s - kW)))
        ws = w_padk.reshape(C_out, C_in, qH, s, qW, s).transpose(0, 1, 3, 5, 2, 4)
        w_eff = ws.reshape(C_out, C_in * s * s, qH, qW)
        C_eff, kH_eff, kW_eff = C_in * s * s, qH, qW
        H_eff, W_eff = H_pad2 // s, W_pad2 // s
    else:
        x_eff, w_eff = x_pad, w
        C_eff, kH_eff, kW_eff = C_in, kH, kW
        H_eff, W_eff = H_pad, W_pad

    # Pad channels to a multiple of 8 so the in-kernel concat is sublane aligned.
    C_pad8 = _round_up(C_eff, 8)
    if C_pad8 != C_eff:
        x_eff = jnp.pad(x_eff, ((0, 0), (0, C_pad8 - C_eff), (0, 0), (0, 0)))
        w_eff = jnp.pad(w_eff, ((0, 0), (0, C_pad8 - C_eff), (0, 0), (0, 0)))

    # Lane-dense flattened sizes.
    H_conv, W_conv = H_eff - kH_eff + 1, W_eff - kW_eff + 1
    n_flat = _round_up(H_conv * W_eff, 128)
    max_shift = (kH_eff - 1) * W_eff + (kW_eff - 1)
    l_flat = _round_up(n_flat + max_shift, 128)
    K = kH_eff * kW_eff * C_pad8

    # Flatten spatial dims row-major, pad tail, cast to bf16 (halves HBM/VMEM).
    x_flat = x_eff.reshape(B, C_pad8, H_eff * W_eff)
    x_flat = jnp.pad(x_flat, ((0, 0), (0, 0), (0, l_flat - H_eff * W_eff)))
    x_flat = x_flat.astype(jnp.bfloat16)

    # Weights -> (C_out, kH*kW*C_pad8) in (kh, kw, c) order; bias separate.
    w_mat = jnp.transpose(w_eff, (0, 2, 3, 1)).reshape(C_out, K).astype(jnp.bfloat16)
    b_col = b.reshape(C_out, 1).astype(jnp.float32)

    # Batch grouping: as many batch elements per grid step as a small VMEM
    # budget allows (amortizes per-step overhead; keeps pipelining for big B).
    per_batch_bytes = C_pad8 * l_flat * 2 + C_out * n_flat * 4 + K * n_flat * 2
    bgroup = max(1, min(B, (8 << 20) // max(per_batch_bytes, 1)))
    while B % bgroup:
        bgroup -= 1

    kernel = functools.partial(_conv2d_kernel, kh_taps=kH_eff, kw_taps=kW_eff,
                               w_row=W_eff, n_flat=n_flat, bgroup=bgroup)

    out_wide = pl.pallas_call(
        kernel,
        out_shape=jax.ShapeDtypeStruct((B, C_out, n_flat), jnp.float32),
        grid_spec=pltpu.PrefetchScalarGridSpec(
            num_scalar_prefetch=0,
            grid=(B // bgroup,),
            in_specs=[
                pl.BlockSpec((bgroup, C_pad8, l_flat), lambda g: (g, 0, 0)),  # x
                pl.BlockSpec((C_out, K), lambda g: (0, 0)),                   # w
                pl.BlockSpec((C_out, 1), lambda g: (0, 0)),                   # bias
            ],
            out_specs=pl.BlockSpec((bgroup, C_out, n_flat), lambda g: (g, 0, 0)),
        ),
        compiler_params=pltpu.CompilerParams(
            dimension_semantics=("parallel",),
            vmem_limit_bytes=64 * 1024 * 1024),
    )(x_flat, w_mat, b_col)

    # Crop padded-width / tail columns (cheap XLA glue, no transposes).
    out = out_wide[:, :, :H_conv * W_eff].reshape(B, C_out, H_conv, W_eff)
    out = out[:, :, :H_out, :W_out]
    return out


def conv2d_reference(x, w, b, *, stride=1, padding=0):
    """Pure-JAX reference mirroring torch.nn.Conv2d exactly (f32)."""
    out = jax.lax.conv_general_dilated(
        x, w,
        window_strides=(stride, stride),
        padding=((padding, padding), (padding, padding)),
        dimension_numbers=("NCHW", "OIHW", "NCHW"),
        precision=jax.lax.Precision.HIGHEST)
    return out + b.reshape(1, -1, 1, 1)


if __name__ == "__main__":
    key = jax.random.PRNGKey(0)

    def run_case(case_key, B, C_in, C_out, H, W, k, s, p):
        k1, k2, k3 = jax.random.split(case_key, 3)
        x = jax.random.normal(k1, (B, C_in, H, W), jnp.float32)
        # PyTorch Conv2d default init range: U(-1/sqrt(fan_in), 1/sqrt(fan_in))
        bound = 1.0 / math.sqrt(C_in * k * k)
        w = jax.random.uniform(k2, (C_out, C_in, k, k), jnp.float32, -bound, bound)
        b = jax.random.uniform(k3, (C_out,), jnp.float32, -bound, bound)

        out = jax.block_until_ready(conv2d_pallas(x, w, b, stride=s, padding=p))
        ref = jax.block_until_ready(conv2d_reference(x, w, b, stride=s, padding=p))
        assert out.shape == ref.shape, (out.shape, ref.shape)
        # bf16 inputs / f32 accumulation -> loosened tolerance vs. f32 reference.
        np.testing.assert_allclose(np.asarray(out), np.asarray(ref),
                                   rtol=2e-2, atol=2e-2)

    ks = jax.random.split(key, 3)
    run_case(ks[0], B=2, C_in=4, C_out=8, H=16, W=16, k=3, s=1, p=1)  # 3x3 "same"
    run_case(ks[1], B=2, C_in=4, C_out=8, H=16, W=16, k=3, s=2, p=1)  # strided 3x3
    run_case(ks[2], B=2, C_in=8, C_out=4, H=16, W=16, k=1, s=1, p=0)  # 1x1 proj
    print("KERNEL_OK")
</pallas_src>

<mosaic_0001>
module attributes {stable_mosaic.version = 11 : i64} {
  func.func @_conv2d_kernel(%arg0: i32, %arg1: memref<2x8x512xbf16, #tpu.memory_space<vmem>>, %arg2: memref<8x72xbf16, #tpu.memory_space<vmem>>, %arg3: memref<8x1xf32, #tpu.memory_space<vmem>>, %arg4: memref<2x8x384xf32, #tpu.memory_space<vmem>>) attributes {dimension_semantics = [#tpu.dimension_semantics<parallel>], iteration_bounds = array<i64: 1>, scalar_prefetch = 0 : i64, scratch_operands = 0 : i64, tpu.core_type = #tpu.core_type<tc>, window_params = [{transform_indices = @transform_0, window_bounds = array<i64: 2, 8, 512>}, {pipeline_mode = #tpu.pipeline_mode<synchronous>, transform_indices = @transform_1, window_bounds = array<i64: 8, 72>}, {pipeline_mode = #tpu.pipeline_mode<synchronous>, transform_indices = @transform_2, window_bounds = array<i64: 8, 1>}, {transform_indices = @transform_3, window_bounds = array<i64: 2, 8, 384>}]} {
    %c0 = arith.constant 0 : index
    %c0_0 = arith.constant 0 : index
    %0 = vector.load %arg2[%c0, %c0_0] : memref<8x72xbf16, #tpu.memory_space<vmem>>, vector<8x72xbf16>
    %c0_1 = arith.constant 0 : index
    %c0_2 = arith.constant 0 : index
    %1 = vector.load %arg3[%c0_1, %c0_2] : memref<8x1xf32, #tpu.memory_space<vmem>>, vector<8x1xf32>
    %c0_3 = arith.constant 0 : index
    %c0_4 = arith.constant 0 : index
    %c0_5 = arith.constant 0 : index
    %2 = vector.load %arg1[%c0_3, %c0_4, %c0_5] : memref<2x8x512xbf16, #tpu.memory_space<vmem>>, vector<1x8x512xbf16>
    %3 = vector.shape_cast %2 : vector<1x8x512xbf16> to vector<8x512xbf16>
    %4 = vector.extract_strided_slice %3 {offsets = [0, 0], sizes = [8, 384], strides = [1, 1]} : vector<8x512xbf16> to vector<8x384xbf16>
    %5 = vector.extract_strided_slice %3 {offsets = [0, 1], sizes = [8, 384], strides = [1, 1]} : vector<8x512xbf16> to vector<8x384xbf16>
    %6 = vector.extract_strided_slice %3 {offsets = [0, 2], sizes = [8, 384], strides = [1, 1]} : vector<8x512xbf16> to vector<8x384xbf16>
    %7 = vector.extract_strided_slice %3 {offsets = [0, 18], sizes = [8, 384], strides = [1, 1]} : vector<8x512xbf16> to vector<8x384xbf16>
    %8 = vector.extract_strided_slice %3 {offsets = [0, 19], sizes = [8, 384], strides = [1, 1]} : vector<8x512xbf16> to vector<8x384xbf16>
    %9 = vector.extract_strided_slice %3 {offsets = [0, 20], sizes = [8, 384], strides = [1, 1]} : vector<8x512xbf16> to vector<8x384xbf16>
    %10 = vector.extract_strided_slice %3 {offsets = [0, 36], sizes = [8, 384], strides = [1, 1]} : vector<8x512xbf16> to vector<8x384xbf16>
    %11 = vector.extract_strided_slice %3 {offsets = [0, 37], sizes = [8, 384], strides = [1, 1]} : vector<8x512xbf16> to vector<8x384xbf16>
    %12 = vector.extract_strided_slice %3 {offsets = [0, 38], sizes = [8, 384], strides = [1, 1]} : vector<8x512xbf16> to vector<8x384xbf16>
    %13 = tpu.concatenate %4, %5, %6, %7, %8, %9, %10, %11, %12 in 0 : vector<8x384xbf16>, vector<8x384xbf16>, vector<8x384xbf16>, vector<8x384xbf16>, vector<8x384xbf16>, vector<8x384xbf16>, vector<8x384xbf16>, vector<8x384xbf16>, vector<8x384xbf16> -> vector<72x384xbf16>
    %cst = arith.constant dense<0.000000e+00> : vector<8x384xf32>
    %14 = tpu.matmul %0, %13, %cst {dimension_numbers = #tpu.dot_dimension_numbers<[1], [0], [0], [1], [0, 0, 1, 1], [], []>} : vector<8x72xbf16>, vector<72x384xbf16>, vector<8x384xf32> -> vector<8x384xf32>
    %15 = vector.broadcast %1 : vector<8x1xf32> to vector<8x384xf32>
    %16 = arith.addf %14, %15 : vector<8x384xf32>
    %c0_6 = arith.constant 0 : index
    %c0_7 = arith.constant 0 : index
    %c0_8 = arith.constant 0 : index
    %17 = vector.load %arg4[%c0_6, %c0_7, %c0_8] : memref<2x8x384xf32, #tpu.memory_space<vmem>>, vector<1x8x384xf32>
    %18 = vector.shape_cast %17 : vector<1x8x384xf32> to vector<8x384xf32>
    %19 = vector.shape_cast %16 : vector<8x384xf32> to vector<1x8x384xf32>
    tpu.vector_store %arg4[%c0_6, %c0_7, %c0_8], %19 {strides = array<i32>} : memref<2x8x384xf32, #tpu.memory_space<vmem>>, vector<1x8x384xf32>,
    %c1 = arith.constant 1 : index
    %c0_9 = arith.constant 0 : index
    %c0_10 = arith.constant 0 : index
    %20 = vector.load %arg1[%c1, %c0_9, %c0_10] : memref<2x8x512xbf16, #tpu.memory_space<vmem>>, vector<1x8x512xbf16>
    %21 = vector.shape_cast %20 : vector<1x8x512xbf16> to vector<8x512xbf16>
    %22 = vector.extract_strided_slice %21 {offsets = [0, 0], sizes = [8, 384], strides = [1, 1]} : vector<8x512xbf16> to vector<8x384xbf16>
    %23 = vector.extract_strided_slice %21 {offsets = [0, 1], sizes = [8, 384], strides = [1, 1]} : vector<8x512xbf16> to vector<8x384xbf16>
    %24 = vector.extract_strided_slice %21 {offsets = [0, 2], sizes = [8, 384], strides = [1, 1]} : vector<8x512xbf16> to vector<8x384xbf16>
    %25 = vector.extract_strided_slice %21 {offsets = [0, 18], sizes = [8, 384], strides = [1, 1]} : vector<8x512xbf16> to vector<8x384xbf16>
    %26 = vector.extract_strided_slice %21 {offsets = [0, 19], sizes = [8, 384], strides = [1, 1]} : vector<8x512xbf16> to vector<8x384xbf16>
    %27 = vector.extract_strided_slice %21 {offsets = [0, 20], sizes = [8, 384], strides = [1, 1]} : vector<8x512xbf16> to vector<8x384xbf16>
    %28 = vector.extract_strided_slice %21 {offsets = [0, 36], sizes = [8, 384], strides = [1, 1]} : vector<8x512xbf16> to vector<8x384xbf16>
    %29 = vector.extract_strided_slice %21 {offsets = [0, 37], sizes = [8, 384], strides = [1, 1]} : vector<8x512xbf16> to vector<8x384xbf16>
    %30 = vector.extract_strided_slice %21 {offsets = [0, 38], sizes = [8, 384], strides = [1, 1]} : vector<8x512xbf16> to vector<8x384xbf16>
    %31 = tpu.concatenate %22, %23, %24, %25, %26, %27, %28, %29, %30 in 0 : vector<8x384xbf16>, vector<8x384xbf16>, vector<8x384xbf16>, vector<8x384xbf16>, vector<8x384xbf16>, vector<8x384xbf16>, vector<8x384xbf16>, vector<8x384xbf16>, vector<8x384xbf16> -> vector<72x384xbf16>
    %cst_11 = arith.constant dense<0.000000e+00> : vector<8x384xf32>
    %32 = tpu.matmul %0, %31, %cst_11 {dimension_numbers = #tpu.dot_dimension_numbers<[1], [0], [0], [1], [0, 0, 1, 1], [], []>} : vector<8x72xbf16>, vector<72x384xbf16>, vector<8x384xf32> -> vector<8x384xf32>
    %33 = vector.broadcast %1 : vector<8x1xf32> to vector<8x384xf32>
    %34 = arith.addf %32, %33 : vector<8x384xf32>
    %c1_12 = arith.constant 1 : index
    %c0_13 = arith.constant 0 : index
    %c0_14 = arith.constant 0 : index
    %35 = vector.load %arg4[%c1_12, %c0_13, %c0_14] : memref<2x8x384xf32, #tpu.memory_space<vmem>>, vector<1x8x384xf32>
    %36 = vector.shape_cast %35 : vector<1x8x384xf32> to vector<8x384xf32>
    %37 = vector.shape_cast %34 : vector<8x384xf32> to vector<1x8x384xf32>
    tpu.vector_store %arg4[%c1_12, %c0_13, %c0_14], %37 {strides = array<i32>} : memref<2x8x384xf32, #tpu.memory_space<vmem>>, vector<1x8x384xf32>,
    return
  }
  func.func @transform_0(%arg0: i32) -> (i32, i32, i32) {
    %c0_i32 = arith.constant 0 : i32
    %c0_i32_0 = arith.constant 0 : i32
    %c0_i32_1 = arith.constant 0 : i32
    return %arg0, %c0_i32, %c0_i32_0 : i32, i32, i32
  }
  func.func @transform_1(%arg0: i32) -> (i32, i32) {
    %c0_i32 = arith.constant 0 : i32
    %c0_i32_0 = arith.constant 0 : i32
    %c0_i32_1 = arith.constant 0 : i32
    return %c0_i32, %c0_i32_0 : i32, i32
  }
  func.func @transform_2(%arg0: i32) -> (i32, i32) {
    %c0_i32 = arith.constant 0 : i32
    %c0_i32_0 = arith.constant 0 : i32
    %c0_i32_1 = arith.constant 0 : i32
    return %c0_i32, %c0_i32_0 : i32, i32
  }
  func.func @transform_3(%arg0: i32) -> (i32, i32, i32) {
    %c0_i32 = arith.constant 0 : i32
    %c0_i32_0 = arith.constant 0 : i32
    %c0_i32_1 = arith.constant 0 : i32
    return %arg0, %c0_i32, %c0_i32_0 : i32, i32, i32
  }
}

</mosaic_0001>

<llo_original>
// kernel: tpu_custom_call.1
$region0: #{tpu_custom_call.1}
  #allocation0 [shape = 'u32[]', space=smem, size = 0x4, offset = 0x4, fixed_abs, tag = 'smem constant byte address 0x4 - core index']
  #allocation1 [shape = 'u32[72,128]{1,0:T(1,128)}', space=vmem, size = 0x9000, scoped, tag = 'internal scratch']
  %s0 = inlined_call_operand.hbm [shape: bf16[2,8,512], index: 0, kind: input, shape index: {}]
  %s1 = inlined_call_operand.vmem [shape: bf16[8,72], index: 1, kind: input, shape index: {}]
  %s2 = inlined_call_operand.vmem [shape: f32[8,1], index: 2, kind: input, shape index: {}]
  %s3 = inlined_call_operand.hbm [shape: f32[2,8,384], index: 3, kind: output, shape index: {}]
  %s4 = sld [smem:[#allocation0]]
  $region26: #{tpu_custom_call.1} parent=0
    _
  %s6 = ssub.s32 1, %s4
  %s7 = scalar_select 0, %s6, %s4
  $region1: #{tpu_custom_call.1} parent=0
    #allocation2 [shape = 'u8[16384]{0}', space=vmem, size = 0x4000, scoped, tag = 'input window, operand 0, single buffered']
    #allocation3 [shape = 's32[1]{0}', space=sflag, size = 0x4, scoped, tag = 'scoped memory for tpu_custom_call.1']
    #allocation4 [shape = 's32[1]{0}', space=sflag, size = 0x4, scoped, tag = 'scoped memory for tpu_custom_call.1']
    #allocation5 [shape = 'u8[24576]{0}', space=vmem, size = 0x6000, scoped, tag = 'output window, operand 0, single buffered']
    %8 = vsyncpa [#allocation3], 0
    %9 = vsyncpa [#allocation4], 0
    // Predicated region
    $region2: #{tpu_custom_call.1} parent=1 // pred_check
      _
    $region3: #{tpu_custom_call.1} parent=1 // pred_check_branch
      %11 = sbr.rel (0) target = $region5
    $region4: #{tpu_custom_call.1} parent=1 // pred_region
      %13 = vsyncadd [#allocation3], 0
      %s14 = sshll.u32 %s0, 4
      %s15 = int_to_ptr.hbm [resolvable:$true] %s14
      %s16 = sshll.u32 [#allocation2], 4
      %s17 = int_to_ptr.vmem [resolvable:$true] %s16
      %22 = dma.hbm_to_vmem [thread:$0]  %s15, 512, %s17, [#allocation3], 256, 256, 16
    $region5: #{tpu_custom_call.1} parent=1 // pred_fallthru
      _
    // Predicated region
    $region6: #{tpu_custom_call.1} parent=1 // pred_check
      _
    $region7: #{tpu_custom_call.1} parent=1 // pred_check_branch
      %24 = sbr.rel (0) target = $region9
    $region8: #{tpu_custom_call.1} parent=1 // pred_region
      _
    $region9: #{tpu_custom_call.1} parent=1 // pred_fallthru
      _
    // Predicated region
    $region10: #{tpu_custom_call.1} parent=1 // pred_check
      _
    $region11: #{tpu_custom_call.1} parent=1 // pred_check_branch
      %26 = sbr.rel (0) target = $region13
    $region12: #{tpu_custom_call.1} parent=1 // pred_region
      _
    $region13: #{tpu_custom_call.1} parent=1 // pred_fallthru
      _
    // Predicated region
    $region14: #{tpu_custom_call.1} parent=1 // pred_check
      _
    $region15: #{tpu_custom_call.1} parent=1 // pred_check_branch
      %28 = sbr.rel (0) target = $region17
    $region16: #{tpu_custom_call.1} parent=1 // pred_region
      %30 = dma.done [#allocation3], 512
    $region17: #{tpu_custom_call.1} parent=1 // pred_fallthru
      _
    %v32 = vld [vmem:[%s1] sm:$0xf]
    %v33 = vld [vmem:[%s2] sm:$0xff]
    %v34 = vld [vmem:[#allocation2] sm:$0xff]
    %v35 = vld [vmem:[#allocation2 + $0x8] sm:$0xff]
    %v38 = vunpack.c.l.b16 %v34
    %v39 = vunpack.c.h.b16 %v34
    %v40 = vunpack.c.l.b16 %v35
    %v41 = vpack.c.b16 %v38, %v38
    %v42 = vpack.c.b16 %v39, %v39
    %v43 = vpack.c.b16 %v40, %v40
    %v44 = vunpack.c.h.b16 %v35
    %v45 = vpack.c.b16 %v44, %v44
    %46 = vrot.lane.b32.xlu0 %v41, 127
    %v47 = vpop.permute.xlu0 %46
    %48 = vrot.lane.b32.xlu0 %v42, 127
    %v49 = vpop.permute.xlu0 %48
    %50 = vrot.lane.b32.xlu0 %v43, 127
    %v51 = vpop.permute.xlu0 %50
    %52 = vrot.lane.b32.xlu0 %v45, 127
    %v53 = vpop.permute.xlu0 %52
    %vm54 = vcmask 1039360
    %v55 = vsel %vm54, %v47, %v49
    %v56 = vsel %vm54, %v49, %v51
    %v57 = vsel %vm54, %v51, %v53
    %58 = vrot.lane.b32.xlu0 %v41, 126
    %v59 = vpop.permute.xlu0 %58
    %60 = vrot.lane.b32.xlu0 %v42, 126
    %v61 = vpop.permute.xlu0 %60
    %62 = vrot.lane.b32.xlu0 %v43, 126
    %v63 = vpop.permute.xlu0 %62
    %64 = vrot.lane.b32.xlu0 %v45, 126
    %v65 = vpop.permute.xlu0 %64
    %vm66 = vcmask 1031168
    %v67 = vsel %vm66, %v59, %v61
    %v68 = vsel %vm66, %v61, %v63
    %v69 = vsel %vm66, %v63, %v65
    %70 = vrot.lane.b32.xlu0 %v41, 110
    %v71 = vpop.permute.xlu0 %70
    %72 = vrot.lane.b32.xlu0 %v42, 110
    %v73 = vpop.permute.xlu0 %72
    %74 = vrot.lane.b32.xlu0 %v43, 110
    %v75 = vpop.permute.xlu0 %74
    %76 = vrot.lane.b32.xlu0 %v45, 110
    %v77 = vpop.permute.xlu0 %76
    %vm78 = vcmask 900096
    %v79 = vsel %vm78, %v71, %v73
    %v80 = vsel %vm78, %v73, %v75
    %v81 = vsel %vm78, %v75, %v77
    %82 = vrot.lane.b32.xlu0 %v41, 109
    %v83 = vpop.permute.xlu0 %82
    %84 = vrot.lane.b32.xlu0 %v42, 109
    %v85 = vpop.permute.xlu0 %84
    %86 = vrot.lane.b32.xlu0 %v43, 109
    %v87 = vpop.permute.xlu0 %86
    %88 = vrot.lane.b32.xlu0 %v45, 109
    %v89 = vpop.permute.xlu0 %88
    %vm90 = vcmask 891904
    %v91 = vsel %vm90, %v83, %v85
    %v92 = vsel %vm90, %v85, %v87
    %v93 = vsel %vm90, %v87, %v89
    %94 = vrot.lane.b32.xlu0 %v41, 108
    %v95 = vpop.permute.xlu0 %94
    %96 = vrot.lane.b32.xlu0 %v42, 108
    %v97 = vpop.permute.xlu0 %96
    %98 = vrot.lane.b32.xlu0 %v43, 108
    %v99 = vpop.permute.xlu0 %98
    %100 = vrot.lane.b32.xlu0 %v45, 108
    %v101 = vpop.permute.xlu0 %100
    %vm102 = vcmask 883712
    %v103 = vsel %vm102, %v95, %v97
    %v104 = vsel %vm102, %v97, %v99
    %v105 = vsel %vm102, %v99, %v101
    %106 = vrot.lane.b32.xlu0 %v41, 92
    %v107 = vpop.permute.xlu0 %106
    %108 = vrot.lane.b32.xlu0 %v42, 92
    %v109 = vpop.permute.xlu0 %108
    %110 = vrot.lane.b32.xlu0 %v43, 92
    %v111 = vpop.permute.xlu0 %110
    %112 = vrot.lane.b32.xlu0 %v45, 92
    %v113 = vpop.permute.xlu0 %112
    %vm114 = vcmask 752640
    %v115 = vsel %vm114, %v107, %v109
    %v116 = vsel %vm114, %v109, %v111
    %v117 = vsel %vm114, %v111, %v113
    %118 = vrot.lane.b32.xlu0 %v41, 91
    %v119 = vpop.permute.xlu0 %118
    %120 = vrot.lane.b32.xlu0 %v42, 91
    %v121 = vpop.permute.xlu0 %120
    %122 = vrot.lane.b32.xlu0 %v43, 91
    %v123 = vpop.permute.xlu0 %122
    %124 = vrot.lane.b32.xlu0 %v45, 91
    %v125 = vpop.permute.xlu0 %124
    %vm126 = vcmask 744448
    %v127 = vsel %vm126, %v119, %v121
    %v128 = vsel %vm126, %v121, %v123
    %v129 = vsel %vm126, %v123, %v125
    %130 = vrot.lane.b32.xlu0 %v41, 90
    %v131 = vpop.permute.xlu0 %130
    %132 = vrot.lane.b32.xlu0 %v42, 90
    %v133 = vpop.permute.xlu0 %132
    %134 = vrot.lane.b32.xlu0 %v43, 90
    %v135 = vpop.permute.xlu0 %134
    %136 = vrot.lane.b32.xlu0 %v45, 90
    %v137 = vpop.permute.xlu0 %136
    %vm138 = vcmask 736256
    %v139 = vsel %vm138, %v131, %v133
    %v140 = vsel %vm138, %v133, %v135
    %v141 = vsel %vm138, %v135, %v137
    %vm142 = vcmask 1043456
    %v145 = vsel %vm142, %v41, %v55
    %v149 = vsel %vm142, %v42, %v56
    %v153 = vsel %vm142, %v43, %v57
    %v157 = vsel %vm142, %v67, %v79
    %v161 = vsel %vm142, %v68, %v80
    %v165 = vsel %vm142, %v69, %v81
    %v169 = vsel %vm142, %v91, %v103
    %v173 = vsel %vm142, %v92, %v104
    %v177 = vsel %vm142, %v93, %v105
    %v181 = vsel %vm142, %v115, %v127
    %v185 = vsel %vm142, %v116, %v128
    %v189 = vsel %vm142, %v117, %v129
    %192 = vset.pattern.permute.xlu0 0
    %193 = vperm.xlu0 %192, %v33
    %v194 = vpop.permute.xlu0 %193
    %vm196 = vcmask 588800
    %v198 = vsel %vm196, %v32, 0
    %v201 = vsel %vm142, %v139, 0
    %v204 = vsel %vm142, %v140, 0
    %v207 = vsel %vm142, %v141, 0
    %209 = vmatpush.bf16.msra.mxu0 0
    %210 = vmatpush.bf16.msra.mxu0 0
    %211 = vmatpush.bf16.msra.mxu0 0
    %212 = vmatpush.bf16.msra.mxu0 %v201
    %213 = vmatpush.bf16.msra.mxu0 %v181
    %214 = vmatpush.bf16.msra.mxu0 %v169
    %215 = vmatpush.bf16.msra.mxu0 %v157
    %216 = vmatpush.bf16.msra.mxu0 %v145
    %217 = vmatmul.bf16.gmra.mxu0 %v198
    %v218 = vpop.f32.mrf.mxu0
    %v219 = vadd.f32 %v194, %v218
    %v220 = vpop.f32.mrf.mxu0
    %221 = vdwg.mxu0
    %222 = vmatpush.bf16.msra.mxu0 0
    %223 = vmatpush.bf16.msra.mxu0 0
    %224 = vmatpush.bf16.msra.mxu0 0
    %225 = vmatpush.bf16.msra.mxu0 %v204
    %226 = vmatpush.bf16.msra.mxu0 %v185
    %227 = vmatpush.bf16.msra.mxu0 %v173
    %228 = vmatpush.bf16.msra.mxu0 %v161
    %229 = vmatpush.bf16.msra.mxu0 %v149
    %230 = vmatmul.bf16.gmra.mxu0 %v198
    %v231 = vpop.f32.mrf.mxu0
    %v232 = vadd.f32 %v194, %v231
    %v233 = vpop.f32.mrf.mxu0
    %234 = vdwg.mxu0
    %235 = vmatpush.bf16.msra.mxu0 0
    %236 = vmatpush.bf16.msra.mxu0 0
    %237 = vmatpush.bf16.msra.mxu0 0
    %238 = vmatpush.bf16.msra.mxu0 %v207
    %239 = vmatpush.bf16.msra.mxu0 %v189
    %240 = vmatpush.bf16.msra.mxu0 %v177
    %241 = vmatpush.bf16.msra.mxu0 %v165
    %242 = vmatpush.bf16.msra.mxu0 %v153
    %243 = vmatmul.bf16.gmra.mxu0 %v198
    %v244 = vpop.f32.mrf.mxu0
    %v245 = vadd.f32 %v194, %v244
    %v246 = vpop.f32.mrf.mxu0
    %247 = vdwg.mxu0
    %248 = vst [vmem:[#allocation5] sm:$0xff] %v219
    %249 = vst [vmem:[#allocation5 + $0x8] sm:$0xff] %v232
    %250 = vst [vmem:[#allocation5 + $0x10] sm:$0xff] %v245
    %s251 = scalar_lea.vmem [#allocation2], 16
    %v252 = vld [vmem:[%s251] sm:$0xff]
    %v253 = vld [vmem:[%s251 + $0x8] sm:$0xff]
    %v256 = vunpack.c.l.b16 %v252
    %v257 = vunpack.c.h.b16 %v252
    %v258 = vunpack.c.l.b16 %v253
    %v259 = vpack.c.b16 %v256, %v256
    %v260 = vpack.c.b16 %v257, %v257
    %v261 = vpack.c.b16 %v258, %v258
    %v262 = vunpack.c.h.b16 %v253
    %v263 = vpack.c.b16 %v262, %v262
    %264 = vrot.lane.b32.xlu0 %v259, 127
    %v265 = vpop.permute.xlu0 %264
    %266 = vrot.lane.b32.xlu0 %v260, 127
    %v267 = vpop.permute.xlu0 %266
    %268 = vrot.lane.b32.xlu0 %v261, 127
    %v269 = vpop.permute.xlu0 %268
    %270 = vrot.lane.b32.xlu0 %v263, 127
    %v271 = vpop.permute.xlu0 %270
    %v272 = vsel %vm54, %v265, %v267
    %v273 = vsel %vm54, %v267, %v269
    %v274 = vsel %vm54, %v269, %v271
    %275 = vrot.lane.b32.xlu0 %v259, 126
    %v276 = vpop.permute.xlu0 %275
    %277 = vrot.lane.b32.xlu0 %v260, 126
    %v278 = vpop.permute.xlu0 %277
    %279 = vrot.lane.b32.xlu0 %v261, 126
    %v280 = vpop.permute.xlu0 %279
    %281 = vrot.lane.b32.xlu0 %v263, 126
    %v282 = vpop.permute.xlu0 %281
    %v283 = vsel %vm66, %v276, %v278
    %v284 = vsel %vm66, %v278, %v280
    %v285 = vsel %vm66, %v280, %v282
    %286 = vrot.lane.b32.xlu0 %v259, 110
    %v287 = vpop.permute.xlu0 %286
    %288 = vrot.lane.b32.xlu0 %v260, 110
    %v289 = vpop.permute.xlu0 %288
    %290 = vrot.lane.b32.xlu0 %v261, 110
    %v291 = vpop.permute.xlu0 %290
    %292 = vrot.lane.b32.xlu0 %v263, 110
    %v293 = vpop.permute.xlu0 %292
    %v294 = vsel %vm78, %v287, %v289
    %v295 = vsel %vm78, %v289, %v291
    %v296 = vsel %vm78, %v291, %v293
    %297 = vrot.lane.b32.xlu0 %v259, 109
    %v298 = vpop.permute.xlu0 %297
    %299 = vrot.lane.b32.xlu0 %v260, 109
    %v300 = vpop.permute.xlu0 %299
    %301 = vrot.lane.b32.xlu0 %v261, 109
    %v302 = vpop.permute.xlu0 %301
    %303 = vrot.lane.b32.xlu0 %v263, 109
    %v304 = vpop.permute.xlu0 %303
    %v305 = vsel %vm90, %v298, %v300
    %v306 = vsel %vm90, %v300, %v302
    %v307 = vsel %vm90, %v302, %v304
    %308 = vrot.lane.b32.xlu0 %v259, 108
    %v309 = vpop.permute.xlu0 %308
    %310 = vrot.lane.b32.xlu0 %v260, 108
    %v311 = vpop.permute.xlu0 %310
    %312 = vrot.lane.b32.xlu0 %v261, 108
    %v313 = vpop.permute.xlu0 %312
    %314 = vrot.lane.b32.xlu0 %v263, 108
    %v315 = vpop.permute.xlu0 %314
    %v316 = vsel %vm102, %v309, %v311
    %v317 = vsel %vm102, %v311, %v313
    %v318 = vsel %vm102, %v313, %v315
    %319 = vrot.lane.b32.xlu0 %v259, 92
    %v320 = vpop.permute.xlu0 %319
    %321 = vrot.lane.b32.xlu0 %v260, 92
    %v322 = vpop.permute.xlu0 %321
    %323 = vrot.lane.b32.xlu0 %v261, 92
    %v324 = vpop.permute.xlu0 %323
    %325 = vrot.lane.b32.xlu0 %v263, 92
    %v326 = vpop.permute.xlu0 %325
    %v327 = vsel %vm114, %v320, %v322
    %v328 = vsel %vm114, %v322, %v324
    %v329 = vsel %vm114, %v324, %v326
    %330 = vrot.lane.b32.xlu0 %v259, 91
    %v331 = vpop.permute.xlu0 %330
    %332 = vrot.lane.b32.xlu0 %v260, 91
    %v333 = vpop.permute.xlu0 %332
    %334 = vrot.lane.b32.xlu0 %v261, 91
    %v335 = vpop.permute.xlu0 %334
    %336 = vrot.lane.b32.xlu0 %v263, 91
    %v337 = vpop.permute.xlu0 %336
    %v338 = vsel %vm126, %v331, %v333
    %v339 = vsel %vm126, %v333, %v335
    %v340 = vsel %vm126, %v335, %v337
    %341 = vrot.lane.b32.xlu0 %v259, 90
    %v342 = vpop.permute.xlu0 %341
    %343 = vrot.lane.b32.xlu0 %v260, 90
    %v344 = vpop.permute.xlu0 %343
    %345 = vrot.lane.b32.xlu0 %v261, 90
    %v346 = vpop.permute.xlu0 %345
    %347 = vrot.lane.b32.xlu0 %v263, 90
    %v348 = vpop.permute.xlu0 %347
    %v349 = vsel %vm138, %v342, %v344
    %v350 = vsel %vm138, %v344, %v346
    %v351 = vsel %vm138, %v346, %v348
    %v354 = vsel %vm142, %v259, %v272
    %v358 = vsel %vm142, %v260, %v273
    %v362 = vsel %vm142, %v261, %v274
    %v366 = vsel %vm142, %v283, %v294
    %v370 = vsel %vm142, %v284, %v295
    %v374 = vsel %vm142, %v285, %v296
    %v378 = vsel %vm142, %v305, %v316
    %v382 = vsel %vm142, %v306, %v317
    %v386 = vsel %vm142, %v307, %v318
    %v390 = vsel %vm142, %v327, %v338
    %v394 = vsel %vm142, %v328, %v339
    %v398 = vsel %vm142, %v329, %v340
    %v401 = vsel %vm142, %v349, 0
    %v404 = vsel %vm142, %v350, 0
    %v407 = vsel %vm142, %v351, 0
    %409 = vmatpush.bf16.msra.mxu0 0
    %410 = vmatpush.bf16.msra.mxu0 0
    %411 = vmatpush.bf16.msra.mxu0 0
    %412 = vmatpush.bf16.msra.mxu0 %v401
    %413 = vmatpush.bf16.msra.mxu0 %v390
    %414 = vmatpush.bf16.msra.mxu0 %v378
    %415 = vmatpush.bf16.msra.mxu0 %v366
    %416 = vmatpush.bf16.msra.mxu0 %v354
    %417 = vmatmul.bf16.gmra.mxu0 %v198
    %v418 = vpop.f32.mrf.mxu0
    %v419 = vadd.f32 %v194, %v418
    %v420 = vpop.f32.mrf.mxu0
    %421 = vdwg.mxu0
    %422 = vmatpush.bf16.msra.mxu0 0
    %423 = vmatpush.bf16.msra.mxu0 0
    %424 = vmatpush.bf16.msra.mxu0 0
    %425 = vmatpush.bf16.msra.mxu0 %v404
    %426 = vmatpush.bf16.msra.mxu0 %v394
    %427 = vmatpush.bf16.msra.mxu0 %v382
    %428 = vmatpush.bf16.msra.mxu0 %v370
    %429 = vmatpush.bf16.msra.mxu0 %v358
    %430 = vmatmul.bf16.gmra.mxu0 %v198
    %v431 = vpop.f32.mrf.mxu0
    %v432 = vadd.f32 %v194, %v431
    %v433 = vpop.f32.mrf.mxu0
    %434 = vdwg.mxu0
    %435 = vmatpush.bf16.msra.mxu0 0
    %436 = vmatpush.bf16.msra.mxu0 0
    %437 = vmatpush.bf16.msra.mxu0 0
    %438 = vmatpush.bf16.msra.mxu0 %v407
    %439 = vmatpush.bf16.msra.mxu0 %v398
    %440 = vmatpush.bf16.msra.mxu0 %v386
    %441 = vmatpush.bf16.msra.mxu0 %v374
    %442 = vmatpush.bf16.msra.mxu0 %v362
    %443 = vmatmul.bf16.gmra.mxu0 %v198
    %v444 = vpop.f32.mrf.mxu0
    %v445 = vadd.f32 %v194, %v444
    %v446 = vpop.f32.mrf.mxu0
    %447 = vdwg.mxu0
    %s448 = scalar_lea.vmem [#allocation5], 24
    %449 = vst [vmem:[%s448] sm:$0xff] %v419
    %450 = vst [vmem:[%s448 + $0x8] sm:$0xff] %v432
    %451 = vst [vmem:[%s448 + $0x10] sm:$0xff] %v445
    // Predicated region
    $region18: #{tpu_custom_call.1} parent=1 // pred_check
      _
    $region19: #{tpu_custom_call.1} parent=1 // pred_check_branch
      %453 = sbr.rel (0) target = $region21
    $region20: #{tpu_custom_call.1} parent=1 // pred_region
      %455 = vsyncadd [#allocation4], 0
      %s456 = sshll.u32 [#allocation5], 4
      %s457 = int_to_ptr.vmem [resolvable:$true] %s456
      %s458 = sshll.u32 %s3, 4
      %s459 = int_to_ptr.hbm [resolvable:$true] %s458
      %464 = dma.vmem_to_hbm [thread:$0]  %s457, 768, %s459, [#allocation4], 384, 384, 24
    $region21: #{tpu_custom_call.1} parent=1 // pred_fallthru
      _
    // Predicated region
    $region22: #{tpu_custom_call.1} parent=1 // pred_check
      _
    $region23: #{tpu_custom_call.1} parent=1 // pred_check_branch
      %466 = sbr.rel (0) target = $region25
    $region24: #{tpu_custom_call.1} parent=1 // pred_region
      %468 = dma.done [#allocation4], 768
    $region25: #{tpu_custom_call.1} parent=1 // pred_fallthru
      _
    %469 = vsyncpa [#allocation3], 1
    %470 = vsyncpa [#allocation4], 1

</llo_original>
